<compile_context>
chip_gen: v7x
topology: tpu7x:2x2x1
jax: 0.10.0
libtpu: 0.0.40
codegen_flags: <defaults>
</compile_context>

<pallas_src>
import functools

import jax
import jax.numpy as jnp
from jax.experimental import pallas as pl
from jax.experimental.pallas import tpu as pltpu

_LANE = 128
_SUBLANE = 8
_MAX_TILE_ROWS = 2048                    # 2048 * 128 * 4 B = 1 MiB per operand
_VMEM_BUDGET_BYTES = 12 * 1024 * 1024    # headroom under v5e's 16 MiB scoped default


def _make_neuron_kernel(n_inputs: int, use_bias: bool):
    """out = tanh(sum_i w[i] * x_i + (w[F] if use_bias else 0)), elementwise."""

    def kernel(*refs):
        w_ref = refs[0]                       # SMEM (n_inputs + 1,)
        x_refs = refs[1:1 + n_inputs]         # each VMEM (tile_rows, 128)
        o_ref = refs[1 + n_inputs]            # VMEM (tile_rows, 128)

        s = w_ref[0] * x_refs[0][...]
        for i in range(1, n_inputs):
            s = s + w_ref[i] * x_refs[i][...]
        if use_bias:
            s = s + w_ref[n_inputs]           # folded bias (ones column)
        o_ref[...] = jnp.tanh(s)

    return kernel


def _xla_forward(xs, w, n, use_bias):
    """Plain-XLA fallback for tiny / non-128-multiple batches."""
    s = w[0] * xs[0]
    for i in range(1, n):
        s = s + w[i] * xs[i]
    if use_bias:
        s = s + w[n]
    return jnp.tanh(s)


@functools.partial(jax.jit, static_argnames=("disable_bias", "min_pallas_batch"))
def neuron_forward(inputs, weights_bias, disable_bias=False, min_pallas_batch=65536):
    """inputs: list/tuple of (B, 1) arrays; weights_bias: (len(inputs)+1,)."""
    inputs = tuple(inputs)
    n = len(inputs)
    B = inputs[0].shape[0]
    use_bias = not disable_bias

    xs = [jnp.asarray(x, jnp.float32).reshape(B) for x in inputs]
    w = jnp.asarray(weights_bias, jnp.float32).reshape(n + 1)

    # Fast path: Pallas launch overhead dominates for toy batches, and a batch
    # that is not a multiple of 128 would need an HBM-copying pad to tile
    # lane-densely — XLA fuses this trivially instead.
    if B < min_pallas_batch or B % _LANE != 0:
        return _xla_forward(xs, w, n, use_bias).reshape(B, 1)

    rows = B // _LANE
    # (B,) -> (rows, 128): contiguous row-major reshape, no data movement.
    xs2 = [x.reshape(rows, _LANE) for x in xs]

    # Pick tile_rows: multiple of 8, capped at 1 MiB/operand, and small enough
    # that the double-buffered footprint of (n inputs + 1 output) fits budget.
    per_row_bytes = (n + 1) * 2 * _LANE * 4
    tile_rows = min(_MAX_TILE_ROWS, _VMEM_BUDGET_BYTES // per_row_bytes)
    tile_rows = max(_SUBLANE, (tile_rows // _SUBLANE) * _SUBLANE)
    if rows <= tile_rows:
        tile_rows = rows                       # full extent: always legal
    grid = (pl.cdiv(rows, tile_rows),)         # partial last block is masked

    kernel = _make_neuron_kernel(n, use_bias)

    out = pl.pallas_call(
        kernel,
        out_shape=jax.ShapeDtypeStruct((rows, _LANE), jnp.float32),
        grid=grid,
        in_specs=[pl.BlockSpec(memory_space=pltpu.MemorySpace.SMEM)]         # weights
        + [pl.BlockSpec((tile_rows, _LANE), lambda i: (i, 0)) for _ in range(n)],
        out_specs=pl.BlockSpec((tile_rows, _LANE), lambda i: (i, 0)),
        compiler_params=pltpu.CompilerParams(
            dimension_semantics=("parallel",),
        ),
    )(w, *xs2)

    # (rows, 128) -> (B, 1): free contiguous reshape, matches `.unsqueeze(1)`.
    return out.reshape(B, 1)


def init_weights_xavier(key, n_inputs):
    # weights_Xavier: U(-1/sqrt(n), 1/sqrt(n)), bias = 0, cat -> weights_bias.
    threshold = 1.0 / jnp.sqrt(jnp.float32(n_inputs))
    weights = jax.random.uniform(key, (n_inputs,), jnp.float32,
                                 minval=-threshold, maxval=threshold)
    bias = jnp.array([0.0], jnp.float32)
    return jnp.concatenate([weights, bias])          # (n_inputs + 1,)


if __name__ == "__main__":
    key = jax.random.PRNGKey(0)
    k_w, k0, k1, k2 = jax.random.split(key, 4)

    batch = 1024                                     # small; multiple of 128
    n_inputs = 3
    inputs = [jax.random.normal(k, (batch, 1), jnp.float32) for k in (k0, k1, k2)]
    weights_bias = init_weights_xavier(k_w, n_inputs)

    # min_pallas_batch=0 forces the Pallas path at this demo size (production
    # default keeps toy batches on the XLA fast path).
    out = neuron_forward(inputs, weights_bias, disable_bias=False,
                         min_pallas_batch=0)
    out = jax.block_until_ready(out)

    # Reference: same math as the torch forward (concat + ones + mul/sum/tanh).
    x_aug = jnp.concatenate(inputs + [jnp.ones((batch, 1), jnp.float32)], axis=1)
    ref = jnp.tanh(jnp.sum(x_aug * weights_bias[None, :], axis=1, keepdims=True))
    assert out.shape == (batch, 1)
    assert jnp.allclose(out, ref, atol=1e-6, rtol=1e-6)

    # disable_bias path (zeros column == dropped bias term), also via Pallas.
    out_nb = jax.block_until_ready(
        neuron_forward(inputs, weights_bias, disable_bias=True, min_pallas_batch=0))
    ref_nb = jnp.tanh(
        jnp.sum(jnp.concatenate(inputs, axis=1) * weights_bias[None, :n_inputs],
                axis=1, keepdims=True))
    assert jnp.allclose(out_nb, ref_nb, atol=1e-6, rtol=1e-6)

    # Small / non-128-multiple batch exercises the XLA fast path.
    small_inputs = [x[:7] for x in inputs]
    out_small = jax.block_until_ready(neuron_forward(small_inputs, weights_bias))
    ref_small = jnp.tanh(jnp.sum(
        jnp.concatenate(small_inputs + [jnp.ones((7, 1), jnp.float32)], axis=1)
        * weights_bias[None, :], axis=1, keepdims=True))
    assert out_small.shape == (7, 1)
    assert jnp.allclose(out_small, ref_small, atol=1e-6, rtol=1e-6)

    print("KERNEL_OK")
</pallas_src>

<mosaic_0001>
module attributes {stable_mosaic.version = 11 : i64} {
  func.func @kernel(%arg0: i32, %arg1: memref<4xf32, #tpu.memory_space<smem>>, %arg2: memref<8x128xf32, #tpu.memory_space<vmem>>, %arg3: memref<8x128xf32, #tpu.memory_space<vmem>>, %arg4: memref<8x128xf32, #tpu.memory_space<vmem>>, %arg5: memref<8x128xf32, #tpu.memory_space<vmem>>) attributes {dimension_semantics = [#tpu.dimension_semantics<parallel>], iteration_bounds = array<i64: 1>, scalar_prefetch = 0 : i64, scratch_operands = 0 : i64, tpu.core_type = #tpu.core_type<tc>, window_params = [{transform_indices = @transform_0, window_bounds = array<i64: 4>}, {transform_indices = @transform_1, window_bounds = array<i64: 8, 128>}, {transform_indices = @transform_2, window_bounds = array<i64: 8, 128>}, {transform_indices = @transform_3, window_bounds = array<i64: 8, 128>}, {transform_indices = @transform_4, window_bounds = array<i64: 8, 128>}]} {
    %c0 = arith.constant 0 : index
    %0 = memref.load %arg1[%c0] : memref<4xf32, #tpu.memory_space<smem>>
    %c0_0 = arith.constant 0 : index
    %c0_1 = arith.constant 0 : index
    %1 = vector.load %arg2[%c0_0, %c0_1] : memref<8x128xf32, #tpu.memory_space<vmem>>, vector<8x128xf32>
    %2 = vector.broadcast %0 : f32 to vector<8x128xf32>
    %3 = arith.mulf %2, %1 : vector<8x128xf32>
    %c1 = arith.constant 1 : index
    %4 = memref.load %arg1[%c1] : memref<4xf32, #tpu.memory_space<smem>>
    %c0_2 = arith.constant 0 : index
    %c0_3 = arith.constant 0 : index
    %5 = vector.load %arg3[%c0_2, %c0_3] : memref<8x128xf32, #tpu.memory_space<vmem>>, vector<8x128xf32>
    %6 = vector.broadcast %4 : f32 to vector<8x128xf32>
    %7 = arith.mulf %6, %5 : vector<8x128xf32>
    %8 = arith.addf %3, %7 : vector<8x128xf32>
    %c2 = arith.constant 2 : index
    %9 = memref.load %arg1[%c2] : memref<4xf32, #tpu.memory_space<smem>>
    %c0_4 = arith.constant 0 : index
    %c0_5 = arith.constant 0 : index
    %10 = vector.load %arg4[%c0_4, %c0_5] : memref<8x128xf32, #tpu.memory_space<vmem>>, vector<8x128xf32>
    %11 = vector.broadcast %9 : f32 to vector<8x128xf32>
    %12 = arith.mulf %11, %10 : vector<8x128xf32>
    %13 = arith.addf %8, %12 : vector<8x128xf32>
    %c3 = arith.constant 3 : index
    %14 = memref.load %arg1[%c3] : memref<4xf32, #tpu.memory_space<smem>>
    %15 = vector.broadcast %14 : f32 to vector<8x128xf32>
    %16 = arith.addf %13, %15 : vector<8x128xf32>
    %17 = math.tanh %16 : vector<8x128xf32>
    %c0_6 = arith.constant 0 : index
    %c0_7 = arith.constant 0 : index
    %18 = vector.load %arg5[%c0_6, %c0_7] : memref<8x128xf32, #tpu.memory_space<vmem>>, vector<8x128xf32>
    tpu.vector_store %arg5[%c0_6, %c0_7], %17 {strides = array<i32>} : memref<8x128xf32, #tpu.memory_space<vmem>>, vector<8x128xf32>,
    return
  }
  func.func @transform_0(%arg0: i32) -> i32 {
    %c0_i32 = arith.constant 0 : i32
    %c0_i32_0 = arith.constant 0 : i32
    return %c0_i32 : i32
  }
  func.func @transform_1(%arg0: i32) -> (i32, i32) {
    %c0_i32 = arith.constant 0 : i32
    %c0_i32_0 = arith.constant 0 : i32
    return %arg0, %c0_i32 : i32, i32
  }
  func.func @transform_2(%arg0: i32) -> (i32, i32) {
    %c0_i32 = arith.constant 0 : i32
    %c0_i32_0 = arith.constant 0 : i32
    return %arg0, %c0_i32 : i32, i32
  }
  func.func @transform_3(%arg0: i32) -> (i32, i32) {
    %c0_i32 = arith.constant 0 : i32
    %c0_i32_0 = arith.constant 0 : i32
    return %arg0, %c0_i32 : i32, i32
  }
  func.func @transform_4(%arg0: i32) -> (i32, i32) {
    %c0_i32 = arith.constant 0 : i32
    %c0_i32_0 = arith.constant 0 : i32
    return %arg0, %c0_i32 : i32, i32
  }
}

</mosaic_0001>

<llo_original>
// kernel: neuron_forward.1
$region0: #{neuron_forward.1}
  #allocation0 [shape = 'u32[]', space=smem, size = 0x4, offset = 0x4, fixed_abs, tag = 'smem constant byte address 0x4 - core index']
  #allocation1 [shape = 'u32[144,128]{1,0:T(1,128)}', space=vmem, size = 0x12000, scoped, tag = 'internal scratch']
  %s0 = inlined_call_operand.vmem [shape: f32[4], index: 0, kind: input, shape index: {}]
  %s1 = inlined_call_operand.vmem [shape: f32[8,128], index: 1, kind: input, shape index: {}]
  %s2 = inlined_call_operand.hbm [shape: f32[8,128], index: 2, kind: input, shape index: {}]
  %s3 = inlined_call_operand.vmem [shape: f32[8,128], index: 3, kind: input, shape index: {}]
  %s4 = inlined_call_operand.hbm [shape: f32[8,128], index: 4, kind: output, shape index: {}]
  %s5 = sld [smem:[#allocation0]]
  $region34: #{neuron_forward.1} parent=0
    _
  %s7 = ssub.s32 1, %s5
  %s8 = scalar_select 0, %s7, %s5
  $region1: #{neuron_forward.1} parent=0
    #allocation2 [shape = 'u8[512]{0}', space=smem, size = 0x200, scoped, tag = 'input window, operand 0, single buffered']
    #allocation3 [shape = 's32[1]{0}', space=sflag, size = 0x4, scoped, tag = 'scoped memory for neuron_forward.1']
    #allocation4 [shape = 's32[1]{0}', space=sflag, size = 0x4, scoped, tag = 'scoped memory for neuron_forward.1']
    #allocation5 [shape = 's32[1]{0}', space=sflag, size = 0x4, scoped, tag = 'scoped memory for neuron_forward.1']
    #allocation6 [shape = 'u8[4096]{0}', space=vmem, size = 0x1000, scoped, tag = 'input window, operand 2, single buffered']
    #allocation7 [shape = 'u8[4096]{0}', space=vmem, size = 0x1000, scoped, tag = 'output window, operand 0, single buffered']
    %9 = vsyncpa [#allocation5], 0
    %10 = vsyncpa [#allocation3], 0
    %11 = vsyncpa [#allocation4], 0
    // Predicated region
    $region2: #{neuron_forward.1} parent=1 // pred_check
      _
    $region3: #{neuron_forward.1} parent=1 // pred_check_branch
      %13 = sbr.rel (0) target = $region5
    $region4: #{neuron_forward.1} parent=1 // pred_region
      %s15 = ssub.s32 16, 16
      %16 = vsyncadd [#allocation5], %s15
      %s18 = sshll.u32 %s0, 4
      %s19 = int_to_ptr.vmem [resolvable:$true] %s18
      %21 = dma.vmem_to_smem %s19, 16, [#allocation2], [#allocation5]
    $region5: #{neuron_forward.1} parent=1 // pred_fallthru
      _
    // Predicated region
    $region6: #{neuron_forward.1} parent=1 // pred_check
      _
    $region7: #{neuron_forward.1} parent=1 // pred_check_branch
      %23 = sbr.rel (0) target = $region9
    $region8: #{neuron_forward.1} parent=1 // pred_region
      _
    $region9: #{neuron_forward.1} parent=1 // pred_fallthru
      _
    // Predicated region
    $region10: #{neuron_forward.1} parent=1 // pred_check
      _
    $region11: #{neuron_forward.1} parent=1 // pred_check_branch
      %25 = sbr.rel (0) target = $region13
    $region12: #{neuron_forward.1} parent=1 // pred_region
      %s27 = ssub.s32 128, 128
      %28 = vsyncadd [#allocation3], %s27
      %s30 = sshll.u32 [#allocation6], 4
      %s31 = int_to_ptr.vmem [resolvable:$true] %s30
      %33 = dma.hbm_to_vmem [thread:$0]  %s2, 128, %s31, [#allocation3]
    $region13: #{neuron_forward.1} parent=1 // pred_fallthru
      _
    // Predicated region
    $region14: #{neuron_forward.1} parent=1 // pred_check
      _
    $region15: #{neuron_forward.1} parent=1 // pred_check_branch
      %35 = sbr.rel (0) target = $region17
    $region16: #{neuron_forward.1} parent=1 // pred_region
      _
    $region17: #{neuron_forward.1} parent=1 // pred_fallthru
      _
    // Predicated region
    $region18: #{neuron_forward.1} parent=1 // pred_check
      _
    $region19: #{neuron_forward.1} parent=1 // pred_check_branch
      %37 = sbr.rel (0) target = $region21
    $region20: #{neuron_forward.1} parent=1 // pred_region
      %38 = dma.done [#allocation5], 16
    $region21: #{neuron_forward.1} parent=1 // pred_fallthru
      _
    // Predicated region
    $region22: #{neuron_forward.1} parent=1 // pred_check
      _
    $region23: #{neuron_forward.1} parent=1 // pred_check_branch
      %40 = sbr.rel (0) target = $region25
    $region24: #{neuron_forward.1} parent=1 // pred_region
      %41 = dma.done [#allocation3], 128
    $region25: #{neuron_forward.1} parent=1 // pred_fallthru
      _
    %42 = sfence
    %s43 = sld [smem:[#allocation2]]
    %v44 = vld [vmem:[%s1] sm:$0xff]
    %v45 = vstv %s43
    %v46 = vmul.f32 %v45, %v44
    %s47 = sld [smem:[#allocation2 + $0x1]]
    %v48 = vld [vmem:[#allocation6] sm:$0xff]
    %v49 = vstv %s47
    %v50 = vmul.f32 %v49, %v48
    %v51 = vadd.f32 %v46, %v50
    %s52 = sld [smem:[#allocation2 + $0x2]]
    %v53 = vld [vmem:[%s3] sm:$0xff]
    %v54 = vstv %s52
    %v55 = vmul.f32 %v54, %v53
    %v56 = vadd.f32 %v51, %v55
    %s57 = sld [smem:[#allocation2 + $0x3]]
    %v58 = vstv %s57
    %v59 = vadd.f32 %v56, %v58
    %v60 = vtanh.pop %v59
    %61 = vst [vmem:[#allocation7] sm:$0xff] %v60
    // Predicated region
    $region26: #{neuron_forward.1} parent=1 // pred_check
      _
    $region27: #{neuron_forward.1} parent=1 // pred_check_branch
      %63 = sbr.rel (0) target = $region29
    $region28: #{neuron_forward.1} parent=1 // pred_region
      %s65 = ssub.s32 128, 128
      %66 = vsyncadd [#allocation4], %s65
      %s68 = sshll.u32 [#allocation7], 4
      %s69 = int_to_ptr.vmem [resolvable:$true] %s68
      %71 = dma.vmem_to_hbm [thread:$0]  %s69, 128, %s4, [#allocation4]
    $region29: #{neuron_forward.1} parent=1 // pred_fallthru
      _
    // Predicated region
    $region30: #{neuron_forward.1} parent=1 // pred_check
      _
    $region31: #{neuron_forward.1} parent=1 // pred_check_branch
      %73 = sbr.rel (0) target = $region33
    $region32: #{neuron_forward.1} parent=1 // pred_region
      %74 = dma.done [#allocation4], 128
    $region33: #{neuron_forward.1} parent=1 // pred_fallthru
      _
    %75 = vsyncpa [#allocation3], 1
    %76 = vsyncpa [#allocation4], 1
    %77 = vsyncpa [#allocation5], 1

</llo_original>
